<compile_context>
chip_gen: v7x
topology: tpu7x:2x2x1
jax: 0.10.0
libtpu: 0.0.40
codegen_flags: <defaults>
</compile_context>

<pallas_src>
import functools

import jax
import jax.numpy as jnp
from jax.experimental import pallas as pl
from jax.experimental.pallas import tpu as pltpu


def _gaussian_mf_kernel(mean_ref, scale_ref, x_ref, o_ref):
    # Scalars from SMEM: mean and scale = -0.5 / clamp(sigma, 0.001)^2.
    mean = mean_ref[0]
    scale = scale_ref[0]
    # Math in f32 (v5e has no bf16 VPU/EUP); I/O keeps the caller's dtype.
    d = x_ref[...].astype(jnp.float32) - mean
    o_ref[...] = jnp.exp(scale * d * d).astype(o_ref.dtype)


@functools.partial(
    jax.jit, static_argnames=("tile_rows", "lanes", "min_pallas_elems")
)
def gaussian_mf(x, mean, sigma, *, tile_rows=4096, lanes=128,
                min_pallas_elems=32768):
    """Elementwise Gaussian membership function (dtype-preserving)."""
    orig_shape = x.shape
    out_dtype = x.dtype if jnp.issubdtype(x.dtype, jnp.floating) else jnp.float32

    # Hoist the divide: scale = -0.5 / clamp(sigma, 0.001)^2.
    sigma_c = jnp.maximum(jnp.asarray(sigma, jnp.float32), jnp.float32(0.001))
    scale = jnp.float32(-0.5) / (sigma_c * sigma_c)
    mean_f = jnp.asarray(mean, jnp.float32)

    n = x.size

    # Fast path: a single-block Pallas launch cannot beat XLA's fused
    # elementwise for tiny tensors; skip the custom call entirely.
    if n < min_pallas_elems:
        d = x.astype(jnp.float32) - mean_f
        return jnp.exp(scale * d * d).astype(out_dtype).reshape(orig_shape)

    xf = x.reshape(-1)
    # Pad only the sub-128 remainder (rare); skipped when n % 128 == 0.
    n_pad = pl.cdiv(n, lanes) * lanes
    padded = n_pad != n
    if padded:
        xf = jnp.pad(xf, (0, n_pad - n))
    rows = n_pad // lanes
    x2d = xf.reshape(rows, lanes)

    # Lane-dense blocks: (tr, 128).  tr is a multiple of 8 whenever it is
    # smaller than the full array, so the (8,128) block rule always holds.
    tr = min(tile_rows, rows)
    if tr == rows and rows >= 16:
        # Would be a single block: split in two so both v7x TensorCores work.
        half = ((-(-rows // 2)) + 7) // 8 * 8  # round_up(ceil(rows/2), 8)
        tr = min(tr, half)
    grid = (pl.cdiv(rows, tr),)

    out2d = pl.pallas_call(
        _gaussian_mf_kernel,
        out_shape=jax.ShapeDtypeStruct((rows, lanes), out_dtype),
        grid=grid,
        in_specs=[
            pl.BlockSpec(memory_space=pltpu.MemorySpace.SMEM),  # mean
            pl.BlockSpec(memory_space=pltpu.MemorySpace.SMEM),  # scale
            pl.BlockSpec((tr, lanes), lambda i: (i, 0)),
        ],
        out_specs=pl.BlockSpec((tr, lanes), lambda i: (i, 0)),
        compiler_params=pltpu.CompilerParams(
            dimension_semantics=("parallel",)
        ),
    )(mean_f.reshape(1), scale.reshape(1), x2d)

    out_flat = out2d.reshape(-1)
    if padded:
        out_flat = out_flat[:n]
    return out_flat.reshape(orig_shape)


def gaussian_mf_ref(x, mean, sigma):
    sigma_c = jnp.maximum(jnp.asarray(sigma, jnp.float32), 0.001)
    return jnp.exp(-0.5 * ((x - mean) / sigma_c) ** 2)


if __name__ == "__main__":
    key = jax.random.PRNGKey(0)

    # Scalar parameters of the module.
    mean = jnp.float32(0.5)
    sigma = jnp.float32(1.5)

    # Small NCHW input consistent with a conv-style feature map.
    x = jax.random.normal(key, (2, 4, 16, 16), dtype=jnp.float32)
    ref = gaussian_mf_ref(x, mean, sigma)

    # 1) Force the Pallas path (guarantees the kernel compiles + runs on TPU).
    out_pallas = jax.block_until_ready(
        gaussian_mf(x, mean, sigma, min_pallas_elems=0))
    assert out_pallas.shape == x.shape and out_pallas.dtype == x.dtype
    assert jnp.allclose(out_pallas, ref, atol=2e-6, rtol=1e-5), \
        "pallas path mismatch vs reference"

    # 2) Default path (small-input fast path under the same jit).
    out_default = jax.block_until_ready(gaussian_mf(x, mean, sigma))
    assert jnp.allclose(out_default, ref, atol=2e-6, rtol=1e-5), \
        "fast path mismatch vs reference"

    # 3) Ragged size (exercises the 128-granular pad + slice-back path).
    key2 = jax.random.PRNGKey(1)
    x2 = jax.random.normal(key2, (3, 5, 7, 11), dtype=jnp.float32)  # 1155 elems
    out2 = jax.block_until_ready(
        gaussian_mf(x2, mean, sigma, min_pallas_elems=0))
    assert jnp.allclose(out2, gaussian_mf_ref(x2, mean, sigma),
                        atol=2e-6, rtol=1e-5), "padded path mismatch"

    print("KERNEL_OK")
</pallas_src>

<mosaic_0001>
module attributes {stable_mosaic.version = 11 : i64} {
  func.func @_gaussian_mf_kernel(%arg0: i32, %arg1: memref<1xf32, #tpu.memory_space<smem>>, %arg2: memref<1xf32, #tpu.memory_space<smem>>, %arg3: memref<8x128xf32, #tpu.memory_space<vmem>>, %arg4: memref<8x128xf32, #tpu.memory_space<vmem>>) attributes {dimension_semantics = [#tpu.dimension_semantics<parallel>], iteration_bounds = array<i64: 2>, scalar_prefetch = 0 : i64, scratch_operands = 0 : i64, tpu.core_type = #tpu.core_type<tc>, window_params = [{transform_indices = @transform_0, window_bounds = array<i64: 1>}, {transform_indices = @transform_1, window_bounds = array<i64: 1>}, {transform_indices = @transform_2, window_bounds = array<i64: 8, 128>}, {transform_indices = @transform_3, window_bounds = array<i64: 8, 128>}]} {
    %c0 = arith.constant 0 : index
    %0 = memref.load %arg1[%c0] : memref<1xf32, #tpu.memory_space<smem>>
    %c0_0 = arith.constant 0 : index
    %1 = memref.load %arg2[%c0_0] : memref<1xf32, #tpu.memory_space<smem>>
    %c0_1 = arith.constant 0 : index
    %c0_2 = arith.constant 0 : index
    %2 = vector.load %arg3[%c0_1, %c0_2] : memref<8x128xf32, #tpu.memory_space<vmem>>, vector<8x128xf32>
    %3 = vector.broadcast %0 : f32 to vector<8x128xf32>
    %4 = arith.subf %2, %3 : vector<8x128xf32>
    %5 = vector.broadcast %1 : f32 to vector<8x128xf32>
    %6 = arith.mulf %5, %4 : vector<8x128xf32>
    %7 = arith.mulf %6, %4 : vector<8x128xf32>
    %8 = math.exp %7 : vector<8x128xf32>
    %c0_3 = arith.constant 0 : index
    %c0_4 = arith.constant 0 : index
    %9 = vector.load %arg4[%c0_3, %c0_4] : memref<8x128xf32, #tpu.memory_space<vmem>>, vector<8x128xf32>
    tpu.vector_store %arg4[%c0_3, %c0_4], %8 {strides = array<i32>} : memref<8x128xf32, #tpu.memory_space<vmem>>, vector<8x128xf32>,
    return
  }
  func.func @transform_0(%arg0: i32) -> i32 {
    %c0_i32 = arith.constant 0 : i32
    %c0_i32_0 = arith.constant 0 : i32
    return %c0_i32 : i32
  }
  func.func @transform_1(%arg0: i32) -> i32 {
    %c0_i32 = arith.constant 0 : i32
    %c0_i32_0 = arith.constant 0 : i32
    return %c0_i32 : i32
  }
  func.func @transform_2(%arg0: i32) -> (i32, i32) {
    %c0_i32 = arith.constant 0 : i32
    %c0_i32_0 = arith.constant 0 : i32
    return %arg0, %c0_i32 : i32, i32
  }
  func.func @transform_3(%arg0: i32) -> (i32, i32) {
    %c0_i32 = arith.constant 0 : i32
    %c0_i32_0 = arith.constant 0 : i32
    return %arg0, %c0_i32 : i32, i32
  }
}

</mosaic_0001>

<llo_original>
// kernel: gaussian_mf.1
$region0: #{gaussian_mf.1}
  #allocation0 [shape = 'u32[]', space=smem, size = 0x4, offset = 0x4, fixed_abs, tag = 'smem constant byte address 0x4 - core index']
  #allocation1 [shape = 'u32[144,128]{1,0:T(1,128)}', space=vmem, size = 0x12000, scoped, tag = 'internal scratch']
  #allocation2 [shape = 'f32[1]{0:T(128)S(6)}', space=smem, size = 0x200, scoped, tag = 'scoped memory for gaussian_mf.1']
  #allocation3 [shape = 'f32[1]{0:T(128)S(6)}', space=smem, size = 0x200, scoped, tag = 'scoped memory for gaussian_mf.1']
  %s0 = inlined_call_operand.<no memory space> [shape: f32[1], index: 0, kind: input, shape index: {}]
  %s1 = inlined_call_operand.<no memory space> [shape: f32[1], index: 1, kind: input, shape index: {}]
  %s2 = inlined_call_operand.vmem [shape: f32[16,128], index: 2, kind: input, shape index: {}]
  %s3 = inlined_call_operand.vmem [shape: f32[16,128], index: 3, kind: output, shape index: {}]
  %s4 = sld [smem:[#allocation0]]
  $region45: #{gaussian_mf.1} parent=0
    _
  %s6 = ssub.s32 1, %s4
  %s7 = scalar_select 0, %s6, %s4
  %8 = sst [smem:[#allocation2]] %s0
  %9 = sst [smem:[#allocation3]] %s1
  loop: start=0, step=1, limit=4
  $region2: #{gaussian_mf.1} parent=0 // loop_pre_header
    _
  $region3: #{gaussian_mf.1} parent=0 // loop_header
    %s11 = sphi 0, %s15
    %p12 = scmp.ge.s32.totalorder %s11, 4
    %s19 = sphi 0, %s19
    %s21 = sphi 0, %s19
    %s22 = sphi 0, %s21
    %s36 = sphi 0, %s22
    %s40 = sphi 0, %s40
    %s42 = sphi 0, %s40
    %s43 = sphi 0, %s42
    %s57 = sphi 0, %s43
    %s63 = sphi 0, %s65
    %s66 = sphi 0, %s63
    %s67 = sphi 0, %s66
    %s83 = sphi 0, %s67
    %s89 = sphi 0, %s91
    %s92 = sphi 0, %s89
    %s93 = sphi 0, %s92
    %s109 = sphi 0, %s93
  $region4: #{gaussian_mf.1} parent=0 // loop_header_branch
    %14 = sbr.rel (%p12) target = $region8
  $region5: #{gaussian_mf.1} parent=0 // loop_body
    %s16 = ssub.s32 %s11, 1
    %s17 = ssub.s32 %s11, 2
    %s18 = sadd.s32 %s11, 1
    %s20 = sadd.s32 %s19, 1
    %p23 = scmp.eq.s32.totalorder %s11, 1
    %p24 = scmp.ne.s32.totalorder %s19, %s21
    %p25 = scmp.eq.s32.totalorder %s11, 0
    %p26 = por %p24, %p25
    %p27 = scmp.ne.s32.totalorder %s19, %s21
    %p28 = scmp.eq.s32.totalorder %s16, 1
    %p29 = por %p27, %p28
    %p30 = scmp.ne.s32.totalorder %s21, %s22
    %p31 = scmp.eq.s32.totalorder %s16, 0
    %p32 = por %p30, %p31
    %p33 = scmp.ne.s32.totalorder %s21, %s22
    %p34 = scmp.eq.s32.totalorder %s17, 1
    %p35 = por %p33, %p34
    %p37 = scmp.ne.s32.totalorder %s22, %s36
    %p38 = scmp.eq.s32.totalorder %s17, 0
    %p39 = por %p37, %p38
    %s41 = sadd.s32 %s40, 1
    %p44 = scmp.eq.s32.totalorder %s11, 1
    %p45 = scmp.ne.s32.totalorder %s40, %s42
    %p46 = scmp.eq.s32.totalorder %s11, 0
    %p47 = por %p45, %p46
    %p48 = scmp.ne.s32.totalorder %s40, %s42
    %p49 = scmp.eq.s32.totalorder %s16, 1
    %p50 = por %p48, %p49
    %p51 = scmp.ne.s32.totalorder %s42, %s43
    %p52 = scmp.eq.s32.totalorder %s16, 0
    %p53 = por %p51, %p52
    %p54 = scmp.ne.s32.totalorder %s42, %s43
    %p55 = scmp.eq.s32.totalorder %s17, 1
    %p56 = por %p54, %p55
    %p58 = scmp.ne.s32.totalorder %s43, %s57
    %p59 = scmp.eq.s32.totalorder %s17, 0
    %p60 = por %p58, %p59
    %s61 = ssub.s32 %s11, %s18
    %p62 = scmp.eq.s32.totalorder %s61, 0
    %s64 = sadd.s32 %s63, 1
    %s65 = scalar_select %p62, %s63, %s64
    %p68 = pneg %p62
    %p69 = scmp.eq.s32.totalorder %s11, 1
    %p70 = por %p68, %p69
    %p71 = scmp.ne.s32.totalorder %s63, %s66
    %p72 = scmp.eq.s32.totalorder %s11, 0
    %p73 = por %p71, %p72
    %p74 = scmp.ne.s32.totalorder %s63, %s66
    %p75 = scmp.eq.s32.totalorder %s16, 1
    %p76 = por %p74, %p75
    %p77 = scmp.ne.s32.totalorder %s66, %s67
    %p78 = scmp.eq.s32.totalorder %s16, 0
    %p79 = por %p77, %p78
    %p80 = scmp.ne.s32.totalorder %s66, %s67
    %p81 = scmp.eq.s32.totalorder %s17, 1
    %p82 = por %p80, %p81
    %p84 = scmp.ne.s32.totalorder %s67, %s83
    %p85 = scmp.eq.s32.totalorder %s17, 0
    %p86 = por %p84, %p85
    %s87 = ssub.s32 %s11, %s18
    %p88 = scmp.eq.s32.totalorder %s87, 0
    %s90 = sadd.s32 %s89, 1
    %s91 = scalar_select %p88, %s89, %s90
    %p94 = pneg %p88
    %p95 = scmp.eq.s32.totalorder %s11, 1
    %p96 = por %p94, %p95
    %p97 = scmp.ne.s32.totalorder %s89, %s92
    %p98 = scmp.eq.s32.totalorder %s11, 0
    %p99 = por %p97, %p98
    %p100 = scmp.ne.s32.totalorder %s89, %s92
    %p101 = scmp.eq.s32.totalorder %s16, 1
    %p102 = por %p100, %p101
    %p103 = scmp.ne.s32.totalorder %s92, %s93
    %p104 = scmp.eq.s32.totalorder %s16, 0
    %p105 = por %p103, %p104
    %p106 = scmp.ne.s32.totalorder %s92, %s93
    %p107 = scmp.eq.s32.totalorder %s17, 1
    %p108 = por %p106, %p107
    %p110 = scmp.ne.s32.totalorder %s93, %s109
    %p111 = scmp.eq.s32.totalorder %s17, 0
    %p112 = por %p110, %p111
    %p113 = scmp.le.s32.totalorder 1, %s11
    %p114 = scmp.lt.s32.totalorder %s11, 3
    %p115 = pnand %p113, %p114
    %p116 = pneg %p115
    // Predicated region
    $region9: #{gaussian_mf.1} parent=5 // pred_check
      _
    $region10: #{gaussian_mf.1} parent=5 // pred_check_branch
      %118 = sbr.rel (%p115) target = $region12
    $region11: #{gaussian_mf.1} parent=5 // pred_region
      %s119 = ssub.s32 %s11, 1
      // Predicated region
      $region13: #{gaussian_mf.1} parent=11 // pred_check
        %p120 = pneg %p32
      $region14: #{gaussian_mf.1} parent=11 // pred_check_branch
        %122 = sbr.rel (%p120) target = $region16
      $region15: #{gaussian_mf.1} parent=11 // pred_region
        _
      $region16: #{gaussian_mf.1} parent=11 // pred_fallthru
        _
      // Predicated region
      $region17: #{gaussian_mf.1} parent=11 // pred_check
        %p123 = pneg %p53
      $region18: #{gaussian_mf.1} parent=11 // pred_check_branch
        %125 = sbr.rel (%p123) target = $region20
      $region19: #{gaussian_mf.1} parent=11 // pred_region
        _
      $region20: #{gaussian_mf.1} parent=11 // pred_fallthru
        _
    $region12: #{gaussian_mf.1} parent=5 // pred_fallthru
      _
    %p126 = scmp.lt.s32.totalorder %s11, 2
    // Predicated region
    $region21: #{gaussian_mf.1} parent=5 // pred_check
      %p127 = pneg %p126
    $region22: #{gaussian_mf.1} parent=5 // pred_check_branch
      %129 = sbr.rel (%p127) target = $region24
    $region23: #{gaussian_mf.1} parent=5 // pred_region
      // Predicated region
      $region25: #{gaussian_mf.1} parent=23 // pred_check
        %p130 = pneg %p73
      $region26: #{gaussian_mf.1} parent=23 // pred_check_branch
        %132 = sbr.rel (%p130) target = $region28
      $region27: #{gaussian_mf.1} parent=23 // pred_region
        %p133 = scmp.lt.s32.totalorder %s11, 1
        %s134 = scalar_select %p133, %s11, 1
        %s135 = smul.addr %s134, 8
        %s136 = scalar_lea.vmem %s2, %s135
      $region28: #{gaussian_mf.1} parent=23 // pred_fallthru
        _
    $region24: #{gaussian_mf.1} parent=5 // pred_fallthru
      _
    %p137 = scmp.le.s32.totalorder 1, %s11
    %p138 = scmp.lt.s32.totalorder %s11, 3
    %p139 = pnand %p137, %p138
    %p140 = pneg %p139
    // Predicated region
    $region29: #{gaussian_mf.1} parent=5 // pred_check
      _
    $region30: #{gaussian_mf.1} parent=5 // pred_check_branch
      %142 = sbr.rel (%p139) target = $region32
    $region31: #{gaussian_mf.1} parent=5 // pred_region
      %s143 = ssub.s32 %s11, 1
      %p144 = pneg %p32
      %p145 = pneg %p29
      %p146 = pneg %p53
      %p147 = pneg %p50
      %p148 = scmp.lt.s32.totalorder %s16, 1
      %s149 = scalar_select %p148, %s16, 1
      %s150 = smul.addr %s149, 8
      %s151 = scalar_lea.vmem %s2, %s150
      %p152 = pneg %p79
      %p153 = pneg %p76
      %p154 = pneg %p105
      %p155 = pneg %p102
      %p156 = scmp.lt.s32.totalorder %s16, 1
      %s157 = scalar_select %p156, %s16, 1
      %s158 = smul.addr %s157, 8
      %s159 = scalar_lea.vmem %s3, %s158
      %p160 = scmp.lt.s32.totalorder %s16, 1
      %s161 = scalar_select %p160, %s16, 1
      %s162 = smul.addr %s161, 8
      %s163 = scalar_lea.vmem %s2, %s162
      %p164 = scmp.lt.s32.totalorder %s16, 1
      %s165 = scalar_select %p164, %s16, 1
      %s166 = smul.addr %s165, 8
      %s167 = scalar_lea.vmem %s3, %s166
      %s168 = sld [smem:[#allocation2]]
      %s169 = sld [smem:[#allocation3]]
      %v170 = vld [vmem:[%s163] sm:$0xff]
      %v171 = vstv %s168
      %v172 = vsub.f32 %v170, %v171
      %v173 = vstv %s169
      %v174 = vmul.f32 %v173, %v172
      %v175 = vmul.f32 %v174, %v172
      %v176 = vmul.f32 %v175, 1.442695
      %v177 = vpow.pop %v176
      %178 = vst [vmem:[%s167] sm:$0xff] %v177
      %p179 = scmp.lt.s32.totalorder %s16, 1
      %s180 = scalar_select %p179, %s16, 1
      %s181 = smul.addr %s180, 8
      %s182 = scalar_lea.vmem %s3, %s181
      // Predicated region
      $region33: #{gaussian_mf.1} parent=31 // pred_check
        %p183 = pneg %p102
      $region34: #{gaussian_mf.1} parent=31 // pred_check_branch
        %185 = sbr.rel (%p183) target = $region36
      $region35: #{gaussian_mf.1} parent=31 // pred_region
        _
      $region36: #{gaussian_mf.1} parent=31 // pred_fallthru
        _
    $region32: #{gaussian_mf.1} parent=5 // pred_fallthru
      _
    %p186 = scmp.le.s32.totalorder 2, %s11
    // Predicated region
    $region37: #{gaussian_mf.1} parent=5 // pred_check
      %p187 = pneg %p186
    $region38: #{gaussian_mf.1} parent=5 // pred_check_branch
      %189 = sbr.rel (%p187) target = $region40
    $region39: #{gaussian_mf.1} parent=5 // pred_region
      %s190 = ssub.s32 %s11, 2
      // Predicated region
      $region41: #{gaussian_mf.1} parent=39 // pred_check
        %p191 = pneg %p108
      $region42: #{gaussian_mf.1} parent=39 // pred_check_branch
        %193 = sbr.rel (%p191) target = $region44
      $region43: #{gaussian_mf.1} parent=39 // pred_region
        %p194 = scmp.lt.s32.totalorder %s17, 1
        %s195 = scalar_select %p194, %s17, 1
        %s196 = smul.addr %s195, 8
        %s197 = scalar_lea.vmem %s3, %s196
      $region44: #{gaussian_mf.1} parent=39 // pred_fallthru
        _
    $region40: #{gaussian_mf.1} parent=5 // pred_fallthru
      _
  $region6: #{gaussian_mf.1} parent=0 // loop_footer
    %s15 = sadd.s32 1, %s11
  $region7: #{gaussian_mf.1} parent=0 // loop_footer_branch
    %10 = sbr.rel target = $region3
  $region8: #{gaussian_mf.1} parent=0 // loop_exit
    _

</llo_original>
